<compile_context>
chip_gen: v7x
topology: tpu7x:2x2x1
jax: 0.10.0
libtpu: 0.0.40
codegen_flags: <defaults>
</compile_context>

<pallas_src>
import functools
import math

import numpy as np

import jax
import jax.numpy as jnp
from jax import lax
from jax.experimental import pallas as pl
from jax.experimental.pallas import tpu as pltpu


# ----------------------------------------------------------------------------
# Fused kernel: qkv linear + RoPE + block-diag causal attention + projection
# ----------------------------------------------------------------------------
def fused_csa_kernel(x_ref, w_qkv_ref, b_qkv_ref, w_proj_ref, b_proj_ref,
                     cos_ref, sin_ref, rot_ref, bias_ref, o_ref,
                     *, B, T, H, HS):
    BT = B * T
    HHS = H * HS

    # ---- QKV projection (bf16 operands, f32 accumulate) ---------------------
    x_bf = x_ref[...].astype(jnp.bfloat16)
    qkv = jnp.dot(x_bf, w_qkv_ref[...],
                  preferred_element_type=jnp.float32) + b_qkv_ref[...]
    # Column layout after the wrapper-side permutation: [Q | K | V],
    # head-major inside each block; the scale 1/sqrt(HS) is folded into Q.

    q2 = qkv[:, 0 * HHS:1 * HHS]                      # (B*T, H*HS)
    k2 = qkv[:, 1 * HHS:2 * HHS]
    v2 = qkv[:, 2 * HHS:3 * HHS]

    # ---- RoPE on the lane-dense (B*T, H*HS) layout (f32) ---------------------
    # rotate-half == matmul with a constant block-diagonal +-1 matrix (MXU).
    cos = cos_ref[...]
    sin = sin_ref[...]
    rot = rot_ref[...]                                # (H*HS, H*HS)
    q2 = q2 * cos + jnp.dot(q2, rot, preferred_element_type=jnp.float32) * sin
    k2 = k2 * cos + jnp.dot(k2, rot, preferred_element_type=jnp.float32) * sin

    # ---- Heads -> sublanes: (B*T, H*HS) -> (H*B*T, HS), row order (h, b, t) --
    def heads_to_rows(m):
        return jnp.concatenate([m[:, h * HS:(h + 1) * HS] for h in range(H)],
                               axis=0)

    q = heads_to_rows(q2).astype(jnp.bfloat16)        # (N, HS), N = H*B*T
    k = heads_to_rows(k2).astype(jnp.bfloat16)
    v = heads_to_rows(v2).astype(jnp.bfloat16)

    # ---- Block-diagonal causal attention: all (h, b) in one matmul ----------
    s = lax.dot_general(q, k, (((1,), (1,)), ((), ())),
                        preferred_element_type=jnp.float32)   # (N, N)
    s = s + bias_ref[...]                             # precomputed 0 / -1e30

    m = jnp.max(s, axis=-1, keepdims=True)
    p = jnp.exp(s - m)
    l = jnp.sum(p, axis=-1, keepdims=True)
    p = (p * pl.reciprocal(l, approx=True)).astype(jnp.bfloat16)   # EUP slot
    y = jnp.dot(p, v, preferred_element_type=jnp.float32)          # (N, HS)

    # ---- Heads back to lanes: (H*B*T, HS) -> (B*T, H*HS) --------------------
    y2 = jnp.concatenate([y[h * BT:(h + 1) * BT, :] for h in range(H)],
                         axis=-1)

    # ---- Output projection ---------------------------------------------------
    out = jnp.dot(y2.astype(jnp.bfloat16), w_proj_ref[...],
                  preferred_element_type=jnp.float32) + b_proj_ref[...]
    o_ref[...] = out.astype(o_ref.dtype)


# ----------------------------------------------------------------------------
# One-time wrapper-side parameter preparation (layout work moved off-kernel)
# ----------------------------------------------------------------------------
def rope_cache(seq_len, n_elem, base=10000.0):
    theta = 1.0 / (base ** (jnp.arange(0, n_elem, 2, dtype=jnp.float32) / n_elem))
    seq_idx = jnp.arange(seq_len, dtype=jnp.float32)
    idx_theta = jnp.outer(seq_idx, theta)
    idx_theta = jnp.concatenate([idx_theta, idx_theta], axis=-1)   # .repeat(1, 2)
    return jnp.cos(idx_theta), jnp.sin(idx_theta)


def prepare_params(w_attn, b_attn, w_proj, b_proj, *, n_head, head_size,
                   rope_n_elem, B, T, rope_base=10000.0):
    H, HS = n_head, head_size
    qkv_dim = w_attn.shape[1]
    assert qkv_dim == 3 * H * HS, "only MHA (n_query_groups == n_head) supported"
    assert rope_n_elem == HS, "partial rotary (rope_n_elem < head_size) unsupported"
    half = HS // 2

    # 1) column permutation: per-head [q,k,v] interleave -> head-major [Q|K|V]
    perm = np.empty(qkv_dim, dtype=np.int32)
    for which in range(3):
        for h in range(H):
            for d in range(HS):
                perm[which * H * HS + h * HS + d] = (h * 3 + which) * HS + d
    w_qkv = jnp.asarray(w_attn)[:, perm]
    b_qkv = jnp.asarray(b_attn)[:, perm]

    # 2) fold the 1/sqrt(HS) attention scale into the Q columns (RoPE is linear)
    scale = np.ones((qkv_dim,), np.float32)
    scale[:H * HS] = 1.0 / math.sqrt(HS)
    w_qkv = w_qkv * scale
    b_qkv = b_qkv * scale

    # 3) RoPE tables tiled to the packed (B*T, H*HS) lane layout
    cos, sin = rope_cache(T, HS, base=rope_base)          # (T, HS)
    cos_bt = jnp.tile(cos, (B, H))                        # (B*T, H*HS)
    sin_bt = jnp.tile(sin, (B, H))

    # 4) rotate-half as a block-diagonal +-1 permutation matrix
    P = np.zeros((HS, HS), np.float32)
    P[np.arange(half) + half, np.arange(half)] = -1.0     # out[:, :half] = -in[:, half:]
    P[np.arange(half), np.arange(half) + half] = 1.0      # out[:, half:] =  in[:, :half]
    rot = np.kron(np.eye(H, dtype=np.float32), P)         # (H*HS, H*HS)

    # 5) additive block-diagonal causal mask bias, rows ordered (h, b, t)
    N = H * B * T
    r = np.arange(N)
    blk, pos = r // T, r % T
    bias = np.where((blk[:, None] == blk[None, :]) &
                    (pos[None, :] <= pos[:, None]), 0.0, -1e30).astype(np.float32)

    return dict(
        w_qkv=w_qkv.astype(jnp.bfloat16),     # bf16 at the MXU inputs
        b_qkv=b_qkv.astype(jnp.float32),
        w_proj=jnp.asarray(w_proj).astype(jnp.bfloat16),
        b_proj=jnp.asarray(b_proj).astype(jnp.float32),
        cos=cos_bt.astype(jnp.float32),
        sin=sin_bt.astype(jnp.float32),
        rot=jnp.asarray(rot),
        bias=jnp.asarray(bias),
    )


# ----------------------------------------------------------------------------
# Wrapper: one grid-less pallas_call, everything resident in VMEM
# ----------------------------------------------------------------------------
def causal_self_attention(x, params, n_head, head_size):
    B, T, C = x.shape
    n_embd = params["w_proj"].shape[1]
    kernel = functools.partial(fused_csa_kernel, B=B, T=T, H=n_head, HS=head_size)

    vmem = pl.BlockSpec(memory_space=pltpu.MemorySpace.VMEM)
    out = pl.pallas_call(
        kernel,
        out_shape=jax.ShapeDtypeStruct((B * T, n_embd), x.dtype),
        in_specs=[vmem] * 9,
        out_specs=vmem,
    )(x.reshape(B * T, C), params["w_qkv"], params["b_qkv"],
      params["w_proj"], params["b_proj"], params["cos"], params["sin"],
      params["rot"], params["bias"])
    return out.reshape(B, T, n_embd)


# ----------------------------------------------------------------------------
# Pure-JAX reference (semantics of the PyTorch forward, MHA / causal case)
# ----------------------------------------------------------------------------
def ref_forward(x, w_attn, b_attn, w_proj, b_proj, cos, sin, n_head, head_size):
    B, T, C = x.shape
    qkv = x @ w_attn + b_attn[0]
    qkv = qkv.reshape(B, T, n_head, 3, head_size).transpose(0, 2, 3, 1, 4)
    q, k, v = qkv[:, :, 0], qkv[:, :, 1], qkv[:, :, 2]
    half = head_size // 2

    def rope(t):
        t1, t2 = t[..., :half], t[..., half:]
        rot = jnp.concatenate([-t2, t1], axis=-1)
        return t * cos[:T] + rot * sin[:T]

    q, k = rope(q), rope(k)
    scale = 1.0 / math.sqrt(head_size)
    s = jnp.einsum('bhqd,bhkd->bhqk', q, k) * scale
    mask = jnp.tril(jnp.ones((T, T), dtype=bool))
    s = jnp.where(mask, s, -jnp.inf)
    p = jax.nn.softmax(s, axis=-1)
    y = jnp.einsum('bhqk,bhkd->bhqd', p, v)
    y = y.transpose(0, 2, 1, 3).reshape(B, T, n_head * head_size)
    return y @ w_proj + b_proj[0]


if __name__ == "__main__":
    # Config (sample config == full config, n_query_groups == n_head).
    B, T = 2, 8
    n_embd = 32
    n_head = 4
    head_size = 8
    rotary_percentage = 1.0
    rope_n_elem = int(head_size * rotary_percentage)            # 8
    qkv_dim = (n_head + 2 * n_head) * head_size                 # 96

    key = jax.random.PRNGKey(0)
    k1, k2, k3, k4, k5 = jax.random.split(key, 5)
    x = jax.random.normal(k1, (B, T, n_embd), dtype=jnp.float32)
    # Linear weights stored transposed, i.e. (in, out): y = x @ W + b.
    w_attn = 0.02 * jax.random.normal(k2, (n_embd, qkv_dim), dtype=jnp.float32)
    b_attn = 0.02 * jax.random.normal(k3, (1, qkv_dim), dtype=jnp.float32)
    w_proj = 0.02 * jax.random.normal(k4, (n_head * head_size, n_embd),
                                      dtype=jnp.float32)
    b_proj = 0.02 * jax.random.normal(k5, (1, n_embd), dtype=jnp.float32)

    # One-time layout preparation (weight permute, scale fold, RoPE/mask tables).
    params = prepare_params(w_attn, b_attn, w_proj, b_proj,
                            n_head=n_head, head_size=head_size,
                            rope_n_elem=rope_n_elem, B=B, T=T)

    out = causal_self_attention(x, params, n_head, head_size)
    jax.block_until_ready(out)

    cos, sin = rope_cache(T, rope_n_elem)
    ref = ref_forward(x, w_attn, b_attn, w_proj, b_proj, cos, sin,
                      n_head, head_size)
    assert out.shape == (B, T, n_embd)
    assert jnp.allclose(out, ref, rtol=1e-2, atol=2e-3), "mismatch vs reference"

    print("KERNEL_OK")
</pallas_src>

<mosaic_0001>
module attributes {stable_mosaic.version = 11 : i64} {
  func.func @fused_csa_kernel(%arg0: memref<16x32xf32, #tpu.memory_space<vmem>>, %arg1: memref<32x96xbf16, #tpu.memory_space<vmem>>, %arg2: memref<1x96xf32, #tpu.memory_space<vmem>>, %arg3: memref<32x32xbf16, #tpu.memory_space<vmem>>, %arg4: memref<1x32xf32, #tpu.memory_space<vmem>>, %arg5: memref<16x32xf32, #tpu.memory_space<vmem>>, %arg6: memref<16x32xf32, #tpu.memory_space<vmem>>, %arg7: memref<32x32xf32, #tpu.memory_space<vmem>>, %arg8: memref<64x64xf32, #tpu.memory_space<vmem>>, %arg9: memref<16x32xf32, #tpu.memory_space<vmem>>) attributes {dimension_semantics = [], scalar_prefetch = 0 : i64, scratch_operands = 0 : i64, tpu.core_type = #tpu.core_type<tc>} {
    %c0 = arith.constant 0 : index
    %c0_0 = arith.constant 0 : index
    %0 = vector.load %arg0[%c0, %c0_0] : memref<16x32xf32, #tpu.memory_space<vmem>>, vector<16x32xf32>
    %1 = arith.truncf %0 : vector<16x32xf32> to vector<16x32xbf16>
    %c0_1 = arith.constant 0 : index
    %c0_2 = arith.constant 0 : index
    %2 = vector.load %arg1[%c0_1, %c0_2] : memref<32x96xbf16, #tpu.memory_space<vmem>>, vector<32x96xbf16>
    %cst = arith.constant dense<0.000000e+00> : vector<16x96xf32>
    %3 = tpu.matmul %1, %2, %cst {dimension_numbers = #tpu.dot_dimension_numbers<[1], [0], [0], [1], [0, 0, 1, 1], [], []>} : vector<16x32xbf16>, vector<32x96xbf16>, vector<16x96xf32> -> vector<16x96xf32>
    %c0_3 = arith.constant 0 : index
    %c0_4 = arith.constant 0 : index
    %4 = vector.load %arg2[%c0_3, %c0_4] : memref<1x96xf32, #tpu.memory_space<vmem>>, vector<1x96xf32>
    %5 = vector.broadcast %4 : vector<1x96xf32> to vector<16x96xf32>
    %6 = arith.addf %3, %5 : vector<16x96xf32>
    %7 = vector.extract_strided_slice %6 {offsets = [0, 0], sizes = [16, 32], strides = [1, 1]} : vector<16x96xf32> to vector<16x32xf32>
    %8 = vector.extract_strided_slice %6 {offsets = [0, 32], sizes = [16, 32], strides = [1, 1]} : vector<16x96xf32> to vector<16x32xf32>
    %9 = vector.extract_strided_slice %6 {offsets = [0, 64], sizes = [16, 32], strides = [1, 1]} : vector<16x96xf32> to vector<16x32xf32>
    %c0_5 = arith.constant 0 : index
    %c0_6 = arith.constant 0 : index
    %10 = vector.load %arg5[%c0_5, %c0_6] : memref<16x32xf32, #tpu.memory_space<vmem>>, vector<16x32xf32>
    %c0_7 = arith.constant 0 : index
    %c0_8 = arith.constant 0 : index
    %11 = vector.load %arg6[%c0_7, %c0_8] : memref<16x32xf32, #tpu.memory_space<vmem>>, vector<16x32xf32>
    %c0_9 = arith.constant 0 : index
    %c0_10 = arith.constant 0 : index
    %12 = vector.load %arg7[%c0_9, %c0_10] : memref<32x32xf32, #tpu.memory_space<vmem>>, vector<32x32xf32>
    %13 = arith.mulf %7, %10 : vector<16x32xf32>
    %cst_11 = arith.constant dense<0.000000e+00> : vector<16x32xf32>
    %14 = tpu.matmul %7, %12, %cst_11 {dimension_numbers = #tpu.dot_dimension_numbers<[1], [0], [0], [1], [0, 0, 1, 1], [], []>} : vector<16x32xf32>, vector<32x32xf32>, vector<16x32xf32> -> vector<16x32xf32>
    %15 = arith.mulf %14, %11 : vector<16x32xf32>
    %16 = arith.addf %13, %15 : vector<16x32xf32>
    %17 = arith.mulf %8, %10 : vector<16x32xf32>
    %cst_12 = arith.constant dense<0.000000e+00> : vector<16x32xf32>
    %18 = tpu.matmul %8, %12, %cst_12 {dimension_numbers = #tpu.dot_dimension_numbers<[1], [0], [0], [1], [0, 0, 1, 1], [], []>} : vector<16x32xf32>, vector<32x32xf32>, vector<16x32xf32> -> vector<16x32xf32>
    %19 = arith.mulf %18, %11 : vector<16x32xf32>
    %20 = arith.addf %17, %19 : vector<16x32xf32>
    %21 = vector.extract_strided_slice %16 {offsets = [0, 0], sizes = [16, 8], strides = [1, 1]} : vector<16x32xf32> to vector<16x8xf32>
    %22 = vector.extract_strided_slice %16 {offsets = [0, 8], sizes = [16, 8], strides = [1, 1]} : vector<16x32xf32> to vector<16x8xf32>
    %23 = vector.extract_strided_slice %16 {offsets = [0, 16], sizes = [16, 8], strides = [1, 1]} : vector<16x32xf32> to vector<16x8xf32>
    %24 = vector.extract_strided_slice %16 {offsets = [0, 24], sizes = [16, 8], strides = [1, 1]} : vector<16x32xf32> to vector<16x8xf32>
    %25 = tpu.concatenate %21, %22, %23, %24 in 0 : vector<16x8xf32>, vector<16x8xf32>, vector<16x8xf32>, vector<16x8xf32> -> vector<64x8xf32>
    %26 = arith.truncf %25 : vector<64x8xf32> to vector<64x8xbf16>
    %27 = vector.extract_strided_slice %20 {offsets = [0, 0], sizes = [16, 8], strides = [1, 1]} : vector<16x32xf32> to vector<16x8xf32>
    %28 = vector.extract_strided_slice %20 {offsets = [0, 8], sizes = [16, 8], strides = [1, 1]} : vector<16x32xf32> to vector<16x8xf32>
    %29 = vector.extract_strided_slice %20 {offsets = [0, 16], sizes = [16, 8], strides = [1, 1]} : vector<16x32xf32> to vector<16x8xf32>
    %30 = vector.extract_strided_slice %20 {offsets = [0, 24], sizes = [16, 8], strides = [1, 1]} : vector<16x32xf32> to vector<16x8xf32>
    %31 = tpu.concatenate %27, %28, %29, %30 in 0 : vector<16x8xf32>, vector<16x8xf32>, vector<16x8xf32>, vector<16x8xf32> -> vector<64x8xf32>
    %32 = arith.truncf %31 : vector<64x8xf32> to vector<64x8xbf16>
    %33 = vector.extract_strided_slice %9 {offsets = [0, 0], sizes = [16, 8], strides = [1, 1]} : vector<16x32xf32> to vector<16x8xf32>
    %34 = vector.extract_strided_slice %9 {offsets = [0, 8], sizes = [16, 8], strides = [1, 1]} : vector<16x32xf32> to vector<16x8xf32>
    %35 = vector.extract_strided_slice %9 {offsets = [0, 16], sizes = [16, 8], strides = [1, 1]} : vector<16x32xf32> to vector<16x8xf32>
    %36 = vector.extract_strided_slice %9 {offsets = [0, 24], sizes = [16, 8], strides = [1, 1]} : vector<16x32xf32> to vector<16x8xf32>
    %37 = tpu.concatenate %33, %34, %35, %36 in 0 : vector<16x8xf32>, vector<16x8xf32>, vector<16x8xf32>, vector<16x8xf32> -> vector<64x8xf32>
    %38 = arith.truncf %37 : vector<64x8xf32> to vector<64x8xbf16>
    %cst_13 = arith.constant dense<0.000000e+00> : vector<64x64xf32>
    %39 = tpu.matmul %26, %32, %cst_13 {dimension_numbers = #tpu.dot_dimension_numbers<[1], [1], [0], [0], [0, 0, 1, 0], [], []>} : vector<64x8xbf16>, vector<64x8xbf16>, vector<64x64xf32> -> vector<64x64xf32>
    %c0_14 = arith.constant 0 : index
    %c0_15 = arith.constant 0 : index
    %40 = vector.load %arg8[%c0_14, %c0_15] : memref<64x64xf32, #tpu.memory_space<vmem>>, vector<64x64xf32>
    %41 = arith.addf %39, %40 : vector<64x64xf32>
    %cst_16 = arith.constant dense<0xFF800000> : vector<64xf32>
    %42 = vector.multi_reduction <maximumf>, %41, %cst_16 [1] : vector<64x64xf32> to vector<64xf32>
    %43 = vector.shape_cast %42 : vector<64xf32> to vector<64x1xf32>
    %44 = vector.broadcast %43 : vector<64x1xf32> to vector<64x64xf32>
    %45 = arith.subf %41, %44 : vector<64x64xf32>
    %46 = math.exp %45 : vector<64x64xf32>
    %cst_17 = arith.constant dense<0.000000e+00> : vector<64xf32>
    %47 = vector.multi_reduction <add>, %46, %cst_17 [1] : vector<64x64xf32> to vector<64xf32>
    %48 = vector.shape_cast %47 : vector<64xf32> to vector<64x1xf32>
    %49 = tpu.reciprocal %48 {approx = true} : vector<64x1xf32> -> vector<64x1xf32>
    %50 = vector.broadcast %49 : vector<64x1xf32> to vector<64x64xf32>
    %51 = arith.mulf %46, %50 : vector<64x64xf32>
    %52 = arith.truncf %51 : vector<64x64xf32> to vector<64x64xbf16>
    %cst_18 = arith.constant dense<0.000000e+00> : vector<64x8xf32>
    %53 = tpu.matmul %52, %38, %cst_18 {dimension_numbers = #tpu.dot_dimension_numbers<[1], [0], [0], [1], [0, 0, 1, 1], [], []>} : vector<64x64xbf16>, vector<64x8xbf16>, vector<64x8xf32> -> vector<64x8xf32>
    %54 = vector.extract_strided_slice %53 {offsets = [0, 0], sizes = [16, 8], strides = [1, 1]} : vector<64x8xf32> to vector<16x8xf32>
    %55 = vector.extract_strided_slice %53 {offsets = [16, 0], sizes = [16, 8], strides = [1, 1]} : vector<64x8xf32> to vector<16x8xf32>
    %56 = vector.extract_strided_slice %53 {offsets = [32, 0], sizes = [16, 8], strides = [1, 1]} : vector<64x8xf32> to vector<16x8xf32>
    %57 = vector.extract_strided_slice %53 {offsets = [48, 0], sizes = [16, 8], strides = [1, 1]} : vector<64x8xf32> to vector<16x8xf32>
    %58 = tpu.concatenate %54, %55, %56, %57 in 1 : vector<16x8xf32>, vector<16x8xf32>, vector<16x8xf32>, vector<16x8xf32> -> vector<16x32xf32>
    %59 = arith.truncf %58 : vector<16x32xf32> to vector<16x32xbf16>
    %c0_19 = arith.constant 0 : index
    %c0_20 = arith.constant 0 : index
    %60 = vector.load %arg3[%c0_19, %c0_20] : memref<32x32xbf16, #tpu.memory_space<vmem>>, vector<32x32xbf16>
    %cst_21 = arith.constant dense<0.000000e+00> : vector<16x32xf32>
    %61 = tpu.matmul %59, %60, %cst_21 {dimension_numbers = #tpu.dot_dimension_numbers<[1], [0], [0], [1], [0, 0, 1, 1], [], []>} : vector<16x32xbf16>, vector<32x32xbf16>, vector<16x32xf32> -> vector<16x32xf32>
    %c0_22 = arith.constant 0 : index
    %c0_23 = arith.constant 0 : index
    %62 = vector.load %arg4[%c0_22, %c0_23] : memref<1x32xf32, #tpu.memory_space<vmem>>, vector<1x32xf32>
    %63 = vector.broadcast %62 : vector<1x32xf32> to vector<16x32xf32>
    %64 = arith.addf %61, %63 : vector<16x32xf32>
    %c0_24 = arith.constant 0 : index
    %c0_25 = arith.constant 0 : index
    %65 = vector.load %arg9[%c0_24, %c0_25] : memref<16x32xf32, #tpu.memory_space<vmem>>, vector<16x32xf32>
    tpu.vector_store %arg9[%c0_24, %c0_25], %64 {strides = array<i32>} : memref<16x32xf32, #tpu.memory_space<vmem>>, vector<16x32xf32>,
    return
  }
}

</mosaic_0001>

<llo_original>
// kernel: tpu_custom_call.1
$region0: #{tpu_custom_call.1}
  #allocation0 [shape = 'u32[]', space=smem, size = 0x4, offset = 0x4, fixed_abs, tag = 'smem constant byte address 0x4 - core index']
  #allocation1 [shape = 'u32[144,128]{1,0:T(1,128)}', space=vmem, size = 0x12000, scoped, tag = 'internal scratch']
  %s0 = inlined_call_operand.hbm [shape: f32[16,32], index: 0, kind: input, shape index: {}]
  %s1 = inlined_call_operand.hbm [shape: bf16[32,96], index: 1, kind: input, shape index: {}]
  %s2 = inlined_call_operand.vmem [shape: f32[1,96], index: 2, kind: input, shape index: {}]
  %s3 = inlined_call_operand.hbm [shape: bf16[32,32], index: 3, kind: input, shape index: {}]
  %s4 = inlined_call_operand.vmem [shape: f32[1,32], index: 4, kind: input, shape index: {}]
  %s5 = inlined_call_operand.vmem [shape: f32[16,32], index: 5, kind: input, shape index: {}]
  %s6 = inlined_call_operand.hbm [shape: f32[16,32], index: 6, kind: input, shape index: {}]
  %s7 = inlined_call_operand.hbm [shape: f32[32,32], index: 7, kind: input, shape index: {}]
  %s8 = inlined_call_operand.hbm [shape: f32[64,64], index: 8, kind: input, shape index: {}]
  %s9 = inlined_call_operand.hbm [shape: f32[16,32], index: 9, kind: output, shape index: {}]
  %s10 = sld [smem:[#allocation0]]
  $region70: #{tpu_custom_call.1} parent=0
    _
  %s12 = ssub.s32 1, %s10
  %s13 = scalar_select 0, %s12, %s10
  $region1: #{tpu_custom_call.1} parent=0
    #allocation2 [shape = 'u8[8192]{0}', space=vmem, size = 0x2000, scoped, tag = 'input window, operand 0, single buffered']
    #allocation3 [shape = 's32[1]{0}', space=sflag, size = 0x4, scoped, tag = 'scoped memory for tpu_custom_call.1']
    #allocation4 [shape = 's32[1]{0}', space=sflag, size = 0x4, scoped, tag = 'scoped memory for tpu_custom_call.1']
    #allocation5 [shape = 'u8[8192]{0}', space=vmem, size = 0x2000, scoped, tag = 'input window, operand 1, single buffered']
    #allocation6 [shape = 's32[1]{0}', space=sflag, size = 0x4, scoped, tag = 'scoped memory for tpu_custom_call.1']
    #allocation7 [shape = 'u8[8192]{0}', space=vmem, size = 0x2000, scoped, tag = 'input window, operand 3, single buffered']
    #allocation8 [shape = 'u8[8192]{0}', space=vmem, size = 0x2000, scoped, tag = 'input window, operand 6, single buffered']
    #allocation9 [shape = 's32[1]{0}', space=sflag, size = 0x4, scoped, tag = 'scoped memory for tpu_custom_call.1']
    #allocation10 [shape = 'u8[16384]{0}', space=vmem, size = 0x4000, scoped, tag = 'input window, operand 7, single buffered']
    #allocation11 [shape = 'u8[32768]{0}', space=vmem, size = 0x8000, scoped, tag = 'input window, operand 8, single buffered']
    #allocation12 [shape = 's32[1]{0}', space=sflag, size = 0x4, scoped, tag = 'scoped memory for tpu_custom_call.1']
    #allocation13 [shape = 'u8[8192]{0}', space=vmem, size = 0x2000, scoped, tag = 'output window, operand 0, single buffered']
    %14 = vsyncpa [#allocation3], 0
    %15 = vsyncpa [#allocation6], 0
    %16 = vsyncpa [#allocation9], 0
    %17 = vsyncpa [#allocation12], 0
    %18 = vsyncpa [#allocation4], 0
    // Predicated region
    $region2: #{tpu_custom_call.1} parent=1 // pred_check
      _
    $region3: #{tpu_custom_call.1} parent=1 // pred_check_branch
      %20 = sbr.rel (0) target = $region5
    $region4: #{tpu_custom_call.1} parent=1 // pred_region
      %s22 = ssub.s32 256, 256
      %23 = vsyncadd [#allocation3], %s22
      %s24 = sshll.u32 [#allocation2], 4
      %s25 = int_to_ptr.vmem [resolvable:$true] %s24
      %30 = dma.hbm_to_vmem [thread:$0]  %s0, 256, %s25, [#allocation3], 128, 128, 8
    $region5: #{tpu_custom_call.1} parent=1 // pred_fallthru
      _
    // Predicated region
    $region6: #{tpu_custom_call.1} parent=1 // pred_check
      _
    $region7: #{tpu_custom_call.1} parent=1 // pred_check_branch
      %32 = sbr.rel (0) target = $region9
    $region8: #{tpu_custom_call.1} parent=1 // pred_region
      %s34 = ssub.s32 256, 256
      %35 = vsyncadd [#allocation6], %s34
      %s36 = sshll.u32 [#allocation5], 4
      %s37 = int_to_ptr.vmem [resolvable:$true] %s36
      %42 = dma.hbm_to_vmem [thread:$0]  %s1, 256, %s37, [#allocation6], 64, 64, 4
    $region9: #{tpu_custom_call.1} parent=1 // pred_fallthru
      _
    // Predicated region
    $region10: #{tpu_custom_call.1} parent=1 // pred_check
      _
    $region11: #{tpu_custom_call.1} parent=1 // pred_check_branch
      %44 = sbr.rel (0) target = $region13
    $region12: #{tpu_custom_call.1} parent=1 // pred_region
      _
    $region13: #{tpu_custom_call.1} parent=1 // pred_fallthru
      _
    // Predicated region
    $region14: #{tpu_custom_call.1} parent=1 // pred_check
      _
    $region15: #{tpu_custom_call.1} parent=1 // pred_check_branch
      %46 = sbr.rel (0) target = $region17
    $region16: #{tpu_custom_call.1} parent=1 // pred_region
      %s48 = ssub.s32 256, 256
      %49 = vsyncadd [#allocation6], %s48
      %s50 = sshll.u32 [#allocation7], 4
      %s51 = int_to_ptr.vmem [resolvable:$true] %s50
      %56 = dma.hbm_to_vmem [thread:$0]  %s3, 256, %s51, [#allocation6], 64, 64, 4
    $region17: #{tpu_custom_call.1} parent=1 // pred_fallthru
      _
    // Predicated region
    $region18: #{tpu_custom_call.1} parent=1 // pred_check
      _
    $region19: #{tpu_custom_call.1} parent=1 // pred_check_branch
      %58 = sbr.rel (0) target = $region21
    $region20: #{tpu_custom_call.1} parent=1 // pred_region
      _
    $region21: #{tpu_custom_call.1} parent=1 // pred_fallthru
      _
    // Predicated region
    $region22: #{tpu_custom_call.1} parent=1 // pred_check
      _
    $region23: #{tpu_custom_call.1} parent=1 // pred_check_branch
      %60 = sbr.rel (0) target = $region25
    $region24: #{tpu_custom_call.1} parent=1 // pred_region
      _
    $region25: #{tpu_custom_call.1} parent=1 // pred_fallthru
      _
    // Predicated region
    $region26: #{tpu_custom_call.1} parent=1 // pred_check
      _
    $region27: #{tpu_custom_call.1} parent=1 // pred_check_branch
      %62 = sbr.rel (0) target = $region29
    $region28: #{tpu_custom_call.1} parent=1 // pred_region
      %s64 = ssub.s32 256, 256
      %65 = vsyncadd [#allocation9], %s64
      %s66 = sshll.u32 [#allocation8], 4
      %s67 = int_to_ptr.vmem [resolvable:$true] %s66
      %72 = dma.hbm_to_vmem [thread:$0]  %s6, 256, %s67, [#allocation9], 128, 128, 8
    $region29: #{tpu_custom_call.1} parent=1 // pred_fallthru
      _
    // Predicated region
    $region30: #{tpu_custom_call.1} parent=1 // pred_check
      _
    $region31: #{tpu_custom_call.1} parent=1 // pred_check_branch
      %74 = sbr.rel (0) target = $region33
    $region32: #{tpu_custom_call.1} parent=1 // pred_region
      %s76 = ssub.s32 512, 512
      %77 = vsyncadd [#allocation9], %s76
      %s78 = sshll.u32 [#allocation10], 4
      %s79 = int_to_ptr.vmem [resolvable:$true] %s78
      %84 = dma.hbm_to_vmem [thread:$0]  %s7, 512, %s79, [#allocation9], 128, 128, 8
    $region33: #{tpu_custom_call.1} parent=1 // pred_fallthru
      _
    // Predicated region
    $region34: #{tpu_custom_call.1} parent=1 // pred_check
      _
    $region35: #{tpu_custom_call.1} parent=1 // pred_check_branch
      %86 = sbr.rel (0) target = $region37
    $region36: #{tpu_custom_call.1} parent=1 // pred_region
      %s88 = ssub.s32 1024, 1024
      %89 = vsyncadd [#allocation12], %s88
      %s90 = sshll.u32 [#allocation11], 4
      %s91 = int_to_ptr.vmem [resolvable:$true] %s90
      %96 = dma.hbm_to_vmem [thread:$0]  %s8, 1024, %s91, [#allocation12], 128, 128, 8
    $region37: #{tpu_custom_call.1} parent=1 // pred_fallthru
      _
    // Predicated region
    $region38: #{tpu_custom_call.1} parent=1 // pred_check
      _
    $region39: #{tpu_custom_call.1} parent=1 // pred_check_branch
      %98 = sbr.rel (0) target = $region41
    $region40: #{tpu_custom_call.1} parent=1 // pred_region
      %99 = dma.done [#allocation3], 256
    $region41: #{tpu_custom_call.1} parent=1 // pred_fallthru
      _
    // Predicated region
    $region42: #{tpu_custom_call.1} parent=1 // pred_check
      _
    $region43: #{tpu_custom_call.1} parent=1 // pred_check_branch
      %101 = sbr.rel (0) target = $region45
    $region44: #{tpu_custom_call.1} parent=1 // pred_region
      %102 = dma.done [#allocation6], 256
    $region45: #{tpu_custom_call.1} parent=1 // pred_fallthru
      _
    // Predicated region
    $region46: #{tpu_custom_call.1} parent=1 // pred_check
      _
    $region47: #{tpu_custom_call.1} parent=1 // pred_check_branch
      %104 = sbr.rel (0) target = $region49
    $region48: #{tpu_custom_call.1} parent=1 // pred_region
      %105 = dma.done [#allocation6], 256
    $region49: #{tpu_custom_call.1} parent=1 // pred_fallthru
      _
    // Predicated region
    $region50: #{tpu_custom_call.1} parent=1 // pred_check
      _
    $region51: #{tpu_custom_call.1} parent=1 // pred_check_branch
      %107 = sbr.rel (0) target = $region53
    $region52: #{tpu_custom_call.1} parent=1 // pred_region
      %108 = dma.done [#allocation9], 256
    $region53: #{tpu_custom_call.1} parent=1 // pred_fallthru
      _
    // Predicated region
    $region54: #{tpu_custom_call.1} parent=1 // pred_check
      _
    $region55: #{tpu_custom_call.1} parent=1 // pred_check_branch
      %110 = sbr.rel (0) target = $region57
    $region56: #{tpu_custom_call.1} parent=1 // pred_region
      %111 = dma.done [#allocation9], 512
    $region57: #{tpu_custom_call.1} parent=1 // pred_fallthru
      _
    // Predicated region
    $region58: #{tpu_custom_call.1} parent=1 // pred_check
      _
    $region59: #{tpu_custom_call.1} parent=1 // pred_check_branch
      %113 = sbr.rel (0) target = $region61
    $region60: #{tpu_custom_call.1} parent=1 // pred_region
      %114 = dma.done [#allocation12], 1024
    $region61: #{tpu_custom_call.1} parent=1 // pred_fallthru
      _
    %v116 = vld [vmem:[#allocation2] sm:$0xff]
    %v117 = vld [vmem:[#allocation2 + $0x8] sm:$0xff]
    %v118 = vpack.c.bf16 %v117, %v116
    %v119 = vld [vmem:[#allocation5] sm:$0xf]
    %v120 = vld [vmem:[#allocation5 + $0x4] sm:$0xf]
    %v121 = vld [vmem:[#allocation5 + $0x8] sm:$0xf]
    %v122 = vld [vmem:[#allocation5 + $0xc] sm:$0xf]
    %v123 = vld [vmem:[%s2] sm:$0x1]
    %v125 = vlaneseq
    %v126 = vshrl.u32 %v125, 7
    %v127 = vsub.s32 0, %v126
    %v128 = vrot.slane %v123, %v127
    %v134 = vunpack.c.l.b16 %v119
    %v135 = vunpack.c.l.b16 %v120
    %v136 = vunpack.c.l.b16 %v121
    %v137 = vunpack.c.l.b16 %v122
    %v138 = vpack.c.b16 %v135, %v134
    %v139 = vpack.c.b16 %v137, %v136
    %vm142 = vcmask 261120
    %v144 = vsel %vm142, %v118, 0
    %146 = vmatprep.subr.bf16.mxu0 0
    %147 = vmatpush1.bf16.msra.mxu0 %v138
    %148 = vmatprep.subr.bf16.mxu0 0
    %149 = vmatpush1.bf16.msra.mxu0 %v139
    %150 = vmatprep.subr.bf16.mxu0 0
    %151 = vmatpush1.bf16.msra.mxu0 0
    %152 = vmatprep.subr.bf16.mxu0 0
    %153 = vmatpush1.bf16.msra.mxu0 0
    %154 = vmatprep.subr.bf16.mxu0 0
    %155 = vmatpush1.bf16.msra.mxu0 0
    %156 = vmatprep.subr.bf16.mxu0 0
    %157 = vmatpush1.bf16.msra.mxu0 0
    %158 = vmatprep.subr.bf16.mxu0 0
    %159 = vmatpush1.bf16.msra.mxu0 0
    %160 = vmatprep.subr.bf16.mxu0 0
    %161 = vmatpush1.bf16.msra.mxu0 0
    %162 = vmatprep.subr.bf16.mxu0 0
    %163 = vmatpush1.bf16.msra.mxu0 0
    %164 = vmatprep.subr.bf16.mxu0 0
    %165 = vmatpush1.bf16.msra.mxu0 0
    %166 = vmatprep.subr.bf16.mxu0 0
    %167 = vmatpush1.bf16.msra.mxu0 0
    %168 = vmatprep.subr.bf16.mxu0 0
    %169 = vmatpush1.bf16.msra.mxu0 0
    %170 = vmatprep.subr.bf16.mxu0 0
    %171 = vmatpush1.bf16.msra.mxu0 0
    %172 = vmatprep.subr.bf16.mxu0 0
    %173 = vmatpush1.bf16.msra.mxu0 0
    %174 = vmatprep.subr.bf16.mxu0 0
    %175 = vmatpush1.bf16.msra.mxu0 0
    %176 = vmatprep.subr.bf16.mxu0 0
    %177 = vmatpush1.bf16.msra.mxu0 0
    %178 = vmatprep.mubr.bf16.mxu0 0
    %179 = vmatmul.mubr.bf16.gmra.mrb[0].mxu0 %v144
    %v180 = vpop.f32.mrb[0].mxu0
    %v181 = vadd.f32 %v128, %v180
    %v182 = vpop.f32.mrb[0].mxu0
    %v183 = vpop.f32.mrb[0].mxu0
    %v184 = vadd.f32 %v128, %v183
    %v185 = vpop.f32.mrb[0].mxu0
    %186 = vdwg.mxu0
    %v187 = vld [vmem:[%s5] sm:$0xff]
    %v188 = vld [vmem:[%s5 + $0x8] sm:$0xff]
    %v189 = vld [vmem:[#allocation8] sm:$0xff]
    %v190 = vld [vmem:[#allocation8 + $0x8] sm:$0xff]
    %v191 = vld [vmem:[#allocation10] sm:$0xff]
    %v192 = vld [vmem:[#allocation10 + $0x8] sm:$0xff]
    %v193 = vld [vmem:[#allocation10 + $0x10] sm:$0xff]
    %v194 = vld [vmem:[#allocation10 + $0x18] sm:$0xff]
    %v195 = vmul.f32 %v181, %v187
    %v196 = vmul.f32 %v184, %v188
    %v198 = vsel %vm142, %v181, 0
    %v201 = vsel %vm142, %v184, 0
    %203 = vmatprep.subr.mxu0 0.0
    %204 = vmatpush1.msra.mxu0 %v191
    %205 = vmatprep.subr.mxu0 0.0
    %206 = vmatpush1.msra.mxu0 %v192
    %207 = vmatprep.subr.mxu0 0.0
    %208 = vmatpush1.msra.mxu0 %v193
    %209 = vmatprep.subr.mxu0 0.0
    %210 = vmatpush1.msra.mxu0 %v194
    %211 = vmatprep.subr.mxu0 0.0
    %212 = vmatpush1.msra.mxu0 0.0
    %213 = vmatprep.subr.mxu0 0.0
    %214 = vmatpush1.msra.mxu0 0.0
    %215 = vmatprep.subr.mxu0 0.0
    %216 = vmatpush1.msra.mxu0 0.0
    %217 = vmatprep.subr.mxu0 0.0
    %218 = vmatpush1.msra.mxu0 0.0
    %219 = vmatprep.subr.mxu0 0.0
    %220 = vmatpush1.msra.mxu0 0.0
    %221 = vmatprep.subr.mxu0 0.0
    %222 = vmatpush1.msra.mxu0 0.0
    %223 = vmatprep.subr.mxu0 0.0
    %224 = vmatpush1.msra.mxu0 0.0
    %225 = vmatprep.subr.mxu0 0.0
    %226 = vmatpush1.msra.mxu0 0.0
    %227 = vmatprep.subr.mxu0 0.0
    %228 = vmatpush1.msra.mxu0 0.0
    %229 = vmatprep.subr.mxu0 0.0
    %230 = vmatpush1.msra.mxu0 0.0
    %231 = vmatprep.subr.mxu0 0.0
    %232 = vmatpush1.msra.mxu0 0.0
    %233 = vmatprep.subr.mxu0 0.0
    %234 = vmatpush1.msra.mxu0 0.0
    %235 = vmatprep.subr.mxu0 0.0
    %236 = vmatpush1.msra.mxu0 0.0
    %237 = vmatprep.subr.mxu0 0.0
    %238 = vmatpush1.msra.mxu0 0.0
    %239 = vmatprep.subr.mxu0 0.0
    %240 = vmatpush1.msra.mxu0 0.0
    %241 = vmatprep.subr.mxu0 0.0
    %242 = vmatpush1.msra.mxu0 0.0
    %243 = vmatprep.subr.mxu0 0.0
    %244 = vmatpush1.msra.mxu0 0.0
    %245 = vmatprep.subr.mxu0 0.0
    %246 = vmatpush1.msra.mxu0 0.0
    %247 = vmatprep.subr.mxu0 0.0
    %248 = vmatpush1.msra.mxu0 0.0
    %249 = vmatprep.subr.mxu0 0.0
    %250 = vmatpush1.msra.mxu0 0.0
    %251 = vmatprep.subr.mxu0 0.0
    %252 = vmatpush1.msra.mxu0 0.0
    %253 = vmatprep.subr.mxu0 0.0
    %254 = vmatpush1.msra.mxu0 0.0
    %255 = vmatprep.subr.mxu0 0.0
    %256 = vmatpush1.msra.mxu0 0.0
    %257 = vmatprep.subr.mxu0 0.0
    %258 = vmatpush1.msra.mxu0 0.0
    %259 = vmatprep.subr.mxu0 0.0
    %260 = vmatpush1.msra.mxu0 0.0
    %261 = vmatprep.subr.mxu0 0.0
    %262 = vmatpush1.msra.mxu0 0.0
    %263 = vmatprep.subr.mxu0 0.0
    %264 = vmatpush1.msra.mxu0 0.0
    %265 = vmatprep.subr.mxu0 0.0
    %266 = vmatpush1.msra.mxu0 0.0
    %267 = vmatprep.mubr.f32.mxu0 0.0
    %268 = vmatmul.mubr.f32.gmra.mrb[0].mxu0 %v198
    %v269 = vpop.f32.mrb[0].mxu0
    %v270 = vadd.f32 0.0, %v269
    %v271 = vpop.f32.mrb[0].mxu0
    %272 = vmatprep.mubr.f32.mxu0 0.0
    %273 = vmatmul.mubr.f32.gmra.mrb[0].mxu0 %v201
    %v274 = vpop.f32.mrb[0].mxu0
    %v275 = vadd.f32 0.0, %v274
    %v276 = vpop.f32.mrb[0].mxu0
    %277 = vdwg.mxu0
    %v278 = vmul.f32 %v270, %v189
    %v279 = vmul.f32 %v275, %v190
    %v280 = vadd.f32 %v195, %v278
    %v281 = vadd.f32 %v196, %v279
    %284 = vrot.lane.b32.xlu0 %v187, 32
    %v285 = vpop.permute.xlu0 %284
    %286 = vrot.lane.b32.xlu0 %v188, 32
    %v287 = vpop.permute.xlu0 %286
    %v290 = vmul.f32 %v181, %v285
    %v291 = vmul.f32 %v184, %v287
    %292 = vrot.lane.b32.xlu0 %v181, 96
    %v293 = vpop.permute.xlu0 %292
    %294 = vrot.lane.b32.xlu0 %v184, 96
    %v295 = vpop.permute.xlu0 %294
    %v296 = vsel %vm142, %v293, 0
    %v298 = vsel %vm142, %v295, 0
    %300 = vmatprep.subr.mxu0 0.0
    %301 = vmatpush1.msra.mxu0 %v191
    %302 = vmatprep.subr.mxu0 0.0
    %303 = vmatpush1.msra.mxu0 %v192
    %304 = vmatprep.subr.mxu0 0.0
    %305 = vmatpush1.msra.mxu0 %v193
    %306 = vmatprep.subr.mxu0 0.0
    %307 = vmatpush1.msra.mxu0 %v194
    %308 = vmatprep.subr.mxu0 0.0
    %309 = vmatpush1.msra.mxu0 0.0
    %310 = vmatprep.subr.mxu0 0.0
    %311 = vmatpush1.msra.mxu0 0.0
    %312 = vmatprep.subr.mxu0 0.0
    %313 = vmatpush1.msra.mxu0 0.0
    %314 = vmatprep.subr.mxu0 0.0
    %315 = vmatpush1.msra.mxu0 0.0
    %316 = vmatprep.subr.mxu0 0.0
    %317 = vmatpush1.msra.mxu0 0.0
    %318 = vmatprep.subr.mxu0 0.0
    %319 = vmatpush1.msra.mxu0 0.0
    %320 = vmatprep.subr.mxu0 0.0
    %321 = vmatpush1.msra.mxu0 0.0
    %322 = vmatprep.subr.mxu0 0.0
    %323 = vmatpush1.msra.mxu0 0.0
    %324 = vmatprep.subr.mxu0 0.0
    %325 = vmatpush1.msra.mxu0 0.0
    %326 = vmatprep.subr.mxu0 0.0
    %327 = vmatpush1.msra.mxu0 0.0
    %328 = vmatprep.subr.mxu0 0.0
    %329 = vmatpush1.msra.mxu0 0.0
    %330 = vmatprep.subr.mxu0 0.0
    %331 = vmatpush1.msra.mxu0 0.0
    %332 = vmatprep.subr.mxu0 0.0
    %333 = vmatpush1.msra.mxu0 0.0
    %334 = vmatprep.subr.mxu0 0.0
    %335 = vmatpush1.msra.mxu0 0.0
    %336 = vmatprep.subr.mxu0 0.0
    %337 = vmatpush1.msra.mxu0 0.0
    %338 = vmatprep.subr.mxu0 0.0
    %339 = vmatpush1.msra.mxu0 0.0
    %340 = vmatprep.subr.mxu0 0.0
    %341 = vmatpush1.msra.mxu0 0.0
    %342 = vmatprep.subr.mxu0 0.0
    %343 = vmatpush1.msra.mxu0 0.0
    %344 = vmatprep.subr.mxu0 0.0
    %345 = vmatpush1.msra.mxu0 0.0
    %346 = vmatprep.subr.mxu0 0.0
    %347 = vmatpush1.msra.mxu0 0.0
    %348 = vmatprep.subr.mxu0 0.0
    %349 = vmatpush1.msra.mxu0 0.0
    %350 = vmatprep.subr.mxu0 0.0
    %351 = vmatpush1.msra.mxu0 0.0
    %352 = vmatprep.subr.mxu0 0.0
    %353 = vmatpush1.msra.mxu0 0.0
    %354 = vmatprep.subr.mxu0 0.0
    %355 = vmatpush1.msra.mxu0 0.0
    %356 = vmatprep.subr.mxu0 0.0
    %357 = vmatpush1.msra.mxu0 0.0
    %358 = vmatprep.subr.mxu0 0.0
    %359 = vmatpush1.msra.mxu0 0.0
    %360 = vmatprep.subr.mxu0 0.0
    %361 = vmatpush1.msra.mxu0 0.0
    %362 = vmatprep.subr.mxu0 0.0
    %363 = vmatpush1.msra.mxu0 0.0
    %364 = vmatprep.mubr.f32.mxu0 0.0
    %365 = vmatmul.mubr.f32.gmra.mrb[0].mxu0 %v296
    %v366 = vpop.f32.mrb[0].mxu0
    %v367 = vadd.f32 0.0, %v366
    %v368 = vpop.f32.mrb[0].mxu0
    %369 = vmatprep.mubr.f32.mxu0 0.0
    %370 = vmatmul.mubr.f32.gmra.mrb[0].mxu0 %v298
    %v371 = vpop.f32.mrb[0].mxu0
    %v372 = vadd.f32 0.0, %v371
    %v373 = vpop.f32.mrb[0].mxu0
    %374 = vdwg.mxu0
    %v375 = vmul.f32 %v367, %v189
    %v376 = vmul.f32 %v372, %v190
    %379 = vrot.lane.b32.xlu0 %v375, 32
    %v380 = vpop.permute.xlu0 %379
    %381 = vrot.lane.b32.xlu0 %v376, 32
    %v382 = vpop.permute.xlu0 %381
    %v385 = vadd.f32 %v290, %v380
    %v386 = vadd.f32 %v291, %v382
    %389 = vrot.lane.b32.xlu0 %v280, 120
    %v390 = vpop.permute.xlu0 %389
    %391 = vrot.lane.b32.xlu0 %v281, 120
    %v392 = vpop.permute.xlu0 %391
    %395 = vrot.lane.b32.xlu0 %v280, 112
    %v396 = vpop.permute.xlu0 %395
    %397 = vrot.lane.b32.xlu0 %v281, 112
    %v398 = vpop.permute.xlu0 %397
    %401 = vrot.lane.b32.xlu0 %v280, 104
    %v402 = vpop.permute.xlu0 %401
    %403 = vrot.lane.b32.xlu0 %v281, 104
    %v404 = vpop.permute.xlu0 %403
    %v407 = vpack.c.bf16 %v281, %v280
    %v408 = vpack.c.bf16 %v392, %v390
    %v409 = vpack.c.bf16 %v398, %v396
    %v410 = vpack.c.bf16 %v404, %v402
    %413 = vrot.lane.b32.xlu0 %v385, 120
    %v414 = vpop.permute.xlu0 %413
    %415 = vrot.lane.b32.xlu0 %v386, 120
    %v416 = vpop.permute.xlu0 %415
    %419 = vrot.lane.b32.xlu0 %v385, 112
    %v420 = vpop.permute.xlu0 %419
    %421 = vrot.lane.b32.xlu0 %v386, 112
    %v422 = vpop.permute.xlu0 %421
    %425 = vrot.lane.b32.xlu0 %v385, 104
    %v426 = vpop.permute.xlu0 %425
    %427 = vrot.lane.b32.xlu0 %v386, 104
    %v428 = vpop.permute.xlu0 %427
    %v431 = vpack.c.bf16 %v386, %v385
    %v432 = vpack.c.bf16 %v416, %v414
    %v433 = vpack.c.bf16 %v422, %v420
    %v434 = vpack.c.bf16 %v428, %v426
    %435 = vrot.lane.b32.xlu0 %v181, 120
    %v436 = vpop.permute.xlu0 %435
    %437 = vrot.lane.b32.xlu0 %v184, 120
    %v438 = vpop.permute.xlu0 %437
    %441 = vrot.lane.b32.xlu0 %v181, 112
    %v442 = vpop.permute.xlu0 %441
    %443 = vrot.lane.b32.xlu0 %v184, 112
    %v444 = vpop.permute.xlu0 %443
    %447 = vrot.lane.b32.xlu0 %v181, 104
    %v448 = vpop.permute.xlu0 %447
    %449 = vrot.lane.b32.xlu0 %v184, 104
    %v450 = vpop.permute.xlu0 %449
    %v453 = vpack.c.bf16 %v184, %v181
    %v454 = vpack.c.bf16 %v438, %v436
    %v455 = vpack.c.bf16 %v444, %v442
    %v456 = vpack.c.bf16 %v450, %v448
    %v457 = vld [vmem:[#allocation11] sm:$0xff]
    %v458 = vld [vmem:[#allocation11 + $0x8] sm:$0xff]
    %v459 = vld [vmem:[#allocation11 + $0x10] sm:$0xff]
    %v460 = vld [vmem:[#allocation11 + $0x18] sm:$0xff]
    %v461 = vld [vmem:[#allocation11 + $0x20] sm:$0xff]
    %v462 = vld [vmem:[#allocation11 + $0x28] sm:$0xff]
    %v463 = vld [vmem:[#allocation11 + $0x30] sm:$0xff]
    %v464 = vld [vmem:[#allocation11 + $0x38] sm:$0xff]
    %469 = vrot.lane.b32.xlu0 %v431, 96
    %v470 = vpop.permute.xlu0 %469
    %471 = vrot.lane.b32.xlu0 %v432, 96
    %v472 = vpop.permute.xlu0 %471
    %473 = vrot.lane.b32.xlu0 %v433, 96
    %v474 = vpop.permute.xlu0 %473
    %475 = vrot.lane.b32.xlu0 %v434, 96
    %v476 = vpop.permute.xlu0 %475
    %vm477 = vcmask 64512
    %v479 = vsel %vm477, %v407, 0
    %v482 = vsel %vm477, %v408, 0
    %v485 = vsel %vm477, %v409, 0
    %v488 = vsel %vm477, %v410, 0
    %v491 = vsel %vm477, %v470, 0
    %v494 = vsel %vm477, %v472, 0
    %v497 = vsel %vm477, %v474, 0
    %v500 = vsel %vm477, %v476, 0
    %502 = vmatprep.subr.bf16.mxu0 0
    %503 = vmatpush1.bf16.xpose.msra.mxu0 %v491
    %504 = vmatprep.subr.bf16.mxu0 0
    %505 = vmatpush1.bf16.xpose.msra.mxu0 %v494
    %506 = vmatprep.subr.bf16.mxu0 0
    %507 = vmatpush1.bf16.xpose.msra.mxu0 %v497
    %508 = vmatprep.subr.bf16.mxu0 0
    %509 = vmatpush1.bf16.xpose.msra.mxu0 %v500
    %510 = vmatprep.subr.bf16.mxu0 0
    %511 = vmatpush1.bf16.xpose.msra.mxu0 0
    %512 = vmatprep.subr.bf16.mxu0 0
    %513 = vmatpush1.bf16.xpose.msra.mxu0 0
    %514 = vmatprep.subr.bf16.mxu0 0
    %515 = vmatpush1.bf16.xpose.msra.mxu0 0
    %516 = vmatprep.subr.bf16.mxu0 0
    %517 = vmatpush1.bf16.xpose.msra.mxu0 0
    %518 = vmatprep.subr.bf16.mxu0 0
    %519 = vmatpush1.bf16.xpose.msra.mxu0 0
    %520 = vmatprep.subr.bf16.mxu0 0
    %521 = vmatpush1.bf16.xpose.msra.mxu0 0
    %522 = vmatprep.subr.bf16.mxu0 0
    %523 = vmatpush1.bf16.xpose.msra.mxu0 0
    %524 = vmatprep.subr.bf16.mxu0 0
    %525 = vmatpush1.bf16.xpose.msra.mxu0 0
    %526 = vmatprep.subr.bf16.mxu0 0
    %527 = vmatpush1.bf16.xpose.msra.mxu0 0
    %528 = vmatprep.subr.bf16.mxu0 0
    %529 = vmatpush1.bf16.xpose.msra.mxu0 0
    %530 = vmatprep.subr.bf16.mxu0 0
    %531 = vmatpush1.bf16.xpose.msra.mxu0 0
    %532 = vmatprep.subr.bf16.mxu0 0
    %533 = vmatpush1.bf16.xpose.msra.mxu0 0
    %534 = vmatprep.mubr.bf16.mxu0 0
    %535 = vmatmul.mubr.bf16.gmra.mrb[0].mxu0 %v479
    %v536 = vpop.f32.mrb[0].mxu0
    %v537 = vadd.f32 %v457, %v536
    %v538 = vpop.f32.mrb[0].mxu0
    %v539 = vpop.f32.mrb[0].mxu0
    %v540 = vadd.f32 %v458, %v539
    %v541 = vpop.f32.mrb[0].mxu0
    %542 = vmatprep.mubr.bf16.mxu0 0
    %543 = vmatmul.mubr.bf16.gmra.mrb[0].mxu0 %v482
    %v544 = vpop.f32.mrb[0].mxu0
    %v545 = vadd.f32 %v459, %v544
    %v546 = vpop.f32.mrb[0].mxu0
    %v547 = vpop.f32.mrb[0].mxu0
    %v548 = vadd.f32 %v460, %v547
    %v549 = vpop.f32.mrb[0].mxu0
    %550 = vmatprep.mubr.bf16.mxu0 0
    %551 = vmatmul.mubr.bf16.gmra.mrb[0].mxu0 %v485
    %v552 = vpop.f32.mrb[0].mxu0
    %v553 = vadd.f32 %v461, %v552
    %v554 = vpop.f32.mrb[0].mxu0
    %v555 = vpop.f32.mrb[0].mxu0
    %v556 = vadd.f32 %v462, %v555
    %v557 = vpop.f32.mrb[0].mxu0
    %558 = vmatprep.mubr.bf16.mxu0 0
    %559 = vmatmul.mubr.bf16.gmra.mrb[0].mxu0 %v488
    %v560 = vpop.f32.mrb[0].mxu0
    %v561 = vadd.f32 %v463, %v560
    %v562 = vpop.f32.mrb[0].mxu0
    %v563 = vpop.f32.mrb[0].mxu0
    %v564 = vadd.f32 %v464, %v563
    %v565 = vpop.f32.mrb[0].mxu0
    %566 = vdwg.mxu0
    %vm567 = vcmask 523264
    %v568 = vsel %vm567, %v537, -inf
    %569 = vmax.xlane.f32.xlu0 %v568
    %v570 = vpop.xlane.xlu0 %569
    %v571 = vsel %vm567, %v540, -inf
    %572 = vmax.xlane.f32.xlu0 %v571
    %v573 = vpop.xlane.xlu0 %572
    %v574 = vsel %vm567, %v545, -inf
    %575 = vmax.xlane.f32.xlu0 %v574
    %v576 = vpop.xlane.xlu0 %575
    %v577 = vsel %vm567, %v548, -inf
    %578 = vmax.xlane.f32.xlu0 %v577
    %v579 = vpop.xlane.xlu0 %578
    %v580 = vsel %vm567, %v553, -inf
    %581 = vmax.xlane.f32.xlu0 %v580
    %v582 = vpop.xlane.xlu0 %581
    %v583 = vsel %vm567, %v556, -inf
    %584 = vmax.xlane.f32.xlu0 %v583
    %v585 = vpop.xlane.xlu0 %584
    %v586 = vsel %vm567, %v561, -inf
    %587 = vmax.xlane.f32.xlu0 %v586
    %v588 = vpop.xlane.xlu0 %587
    %v589 = vsel %vm567, %v564, -inf
    %590 = vmax.xlane.f32.xlu0 %v589
    %v591 = vpop.xlane.xlu0 %590
    %v592 = vsub.f32 %v537, %v570
    %v593 = vsub.f32 %v540, %v573
    %v594 = vsub.f32 %v545, %v576
    %v595 = vsub.f32 %v548, %v579
    %v596 = vsub.f32 %v553, %v582
    %v597 = vsub.f32 %v556, %v585
    %v598 = vsub.f32 %v561, %v588
    %v599 = vsub.f32 %v564, %v591
    %v600 = vmul.f32 %v592, 1.442695
    %v601 = vpow.pop %v600
    %v602 = vmul.f32 %v593, 1.442695
    %v603 = vpow.pop %v602
    %v604 = vmul.f32 %v594, 1.442695
    %v605 = vpow.pop %v604
    %v606 = vmul.f32 %v595, 1.442695
    %v607 = vpow.pop %v606
    %v608 = vmul.f32 %v596, 1.442695
    %v609 = vpow.pop %v608
    %v610 = vmul.f32 %v597, 1.442695
    %v611 = vpow.pop %v610
    %v612 = vmul.f32 %v598, 1.442695
    %v613 = vpow.pop %v612
    %v614 = vmul.f32 %v599, 1.442695
    %v615 = vpow.pop %v614
    %v616 = vsel %vm567, %v601, 0.0
    %617 = vadd.xlane.f32.xlu0 %v616
    %v618 = vpop.xlane.xlu0 %617
    %v619 = vsel %vm567, %v603, 0.0
    %620 = vadd.xlane.f32.xlu0 %v619
    %v621 = vpop.xlane.xlu0 %620
    %v622 = vsel %vm567, %v605, 0.0
    %623 = vadd.xlane.f32.xlu0 %v622
    %v624 = vpop.xlane.xlu0 %623
    %v625 = vsel %vm567, %v607, 0.0
    %626 = vadd.xlane.f32.xlu0 %v625
    %v627 = vpop.xlane.xlu0 %626
    %v628 = vsel %vm567, %v609, 0.0
    %629 = vadd.xlane.f32.xlu0 %v628
    %v630 = vpop.xlane.xlu0 %629
    %v631 = vsel %vm567, %v611, 0.0
    %632 = vadd.xlane.f32.xlu0 %v631
    %v633 = vpop.xlane.xlu0 %632
    %v634 = vsel %vm567, %v613, 0.0
    %635 = vadd.xlane.f32.xlu0 %v634
    %v636 = vpop.xlane.xlu0 %635
    %v637 = vsel %vm567, %v615, 0.0
    %638 = vadd.xlane.f32.xlu0 %v637
    %v639 = vpop.xlane.xlu0 %638
    %v640 = vrcp.pop %v618
    %v641 = vrcp.pop %v621
    %v642 = vrcp.pop %v624
    %v643 = vrcp.pop %v627
    %v644 = vrcp.pop %v630
    %v645 = vrcp.pop %v633
    %v646 = vrcp.pop %v636
    %v647 = vrcp.pop %v639
    %v648 = vmul.f32 %v601, %v640
    %v649 = vmul.f32 %v603, %v641
    %v650 = vmul.f32 %v605, %v642
    %v651 = vmul.f32 %v607, %v643
    %v652 = vmul.f32 %v609, %v644
    %v653 = vmul.f32 %v611, %v645
    %v654 = vmul.f32 %v613, %v646
    %v655 = vmul.f32 %v615, %v647
    %v656 = vpack.c.bf16 %v649, %v648
    %v657 = vpack.c.bf16 %v651, %v650
    %v658 = vpack.c.bf16 %v653, %v652
    %v659 = vpack.c.bf16 %v655, %v654
    %664 = vrot.lane.b32.xlu0 %v453, 64
    %v665 = vpop.permute.xlu0 %664
    %666 = vrot.lane.b32.xlu0 %v454, 64
    %v667 = vpop.permute.xlu0 %666
    %668 = vrot.lane.b32.xlu0 %v455, 64
    %v669 = vpop.permute.xlu0 %668
    %670 = vrot.lane.b32.xlu0 %v456, 64
    %v671 = vpop.permute.xlu0 %670
    %v677 = vsel %vm567, %v656, 0
    %v680 = vsel %vm567, %v657, 0
    %v683 = vsel %vm567, %v658, 0
    %v686 = vsel %vm567, %v659, 0
    %688 = vmatprep.subr.bf16.mxu0 0
    %689 = vmatpush1.bf16.msra.mxu0 %v665
    %690 = vmatprep.subr.bf16.mxu0 0
    %691 = vmatpush1.bf16.msra.mxu0 %v667
    %692 = vmatprep.subr.bf16.mxu0 0
    %693 = vmatpush1.bf16.msra.mxu0 %v669
    %694 = vmatprep.subr.bf16.mxu0 0
    %695 = vmatpush1.bf16.msra.mxu0 %v671
    %696 = vmatprep.subr.bf16.mxu0 0
    %697 = vmatpush1.bf16.msra.mxu0 0
    %698 = vmatprep.subr.bf16.mxu0 0
    %699 = vmatpush1.bf16.msra.mxu0 0
    %700 = vmatprep.subr.bf16.mxu0 0
    %701 = vmatpush1.bf16.msra.mxu0 0
    %702 = vmatprep.subr.bf16.mxu0 0
    %703 = vmatpush1.bf16.msra.mxu0 0
    %704 = vmatprep.subr.bf16.mxu0 0
    %705 = vmatpush1.bf16.msra.mxu0 0
    %706 = vmatprep.subr.bf16.mxu0 0
    %707 = vmatpush1.bf16.msra.mxu0 0
    %708 = vmatprep.subr.bf16.mxu0 0
    %709 = vmatpush1.bf16.msra.mxu0 0
    %710 = vmatprep.subr.bf16.mxu0 0
    %711 = vmatpush1.bf16.msra.mxu0 0
    %712 = vmatprep.subr.bf16.mxu0 0
    %713 = vmatpush1.bf16.msra.mxu0 0
    %714 = vmatprep.subr.bf16.mxu0 0
    %715 = vmatpush1.bf16.msra.mxu0 0
    %716 = vmatprep.subr.bf16.mxu0 0
    %717 = vmatpush1.bf16.msra.mxu0 0
    %718 = vmatprep.subr.bf16.mxu0 0
    %719 = vmatpush1.bf16.msra.mxu0 0
    %720 = vmatprep.mubr.bf16.mxu0 0
    %721 = vmatmul.mubr.bf16.gmra.mrb[0].mxu0 %v677
    %v722 = vpop.f32.mrb[0].mxu0
    %v723 = vadd.f32 0.0, %v722
    %v724 = vpop.f32.mrb[0].mxu0
    %v725 = vpop.f32.mrb[0].mxu0
    %v726 = vadd.f32 0.0, %v725
    %v727 = vpop.f32.mrb[0].mxu0
    %728 = vmatprep.mubr.bf16.mxu0 0
    %729 = vmatmul.mubr.bf16.gmra.mrb[0].mxu0 %v680
    %v730 = vpop.f32.mrb[0].mxu0
    %v731 = vadd.f32 0.0, %v730
    %v732 = vpop.f32.mrb[0].mxu0
    %v733 = vpop.f32.mrb[0].mxu0
    %v734 = vadd.f32 0.0, %v733
    %v735 = vpop.f32.mrb[0].mxu0
    %736 = vmatprep.mubr.bf16.mxu0 0
    %737 = vmatmul.mubr.bf16.gmra.mrb[0].mxu0 %v683
    %v738 = vpop.f32.mrb[0].mxu0
    %v739 = vadd.f32 0.0, %v738
    %v740 = vpop.f32.mrb[0].mxu0
    %v741 = vpop.f32.mrb[0].mxu0
    %v742 = vadd.f32 0.0, %v741
    %v743 = vpop.f32.mrb[0].mxu0
    %744 = vmatprep.mubr.bf16.mxu0 0
    %745 = vmatmul.mubr.bf16.gmra.mrb[0].mxu0 %v686
    %v746 = vpop.f32.mrb[0].mxu0
    %v747 = vadd.f32 0.0, %v746
    %v748 = vpop.f32.mrb[0].mxu0
    %v749 = vpop.f32.mrb[0].mxu0
    %v750 = vadd.f32 0.0, %v749
    %v751 = vpop.f32.mrb[0].mxu0
    %752 = vdwg.mxu0
    %755 = vrot.lane.b32.xlu0 %v731, 8
    %v756 = vpop.permute.xlu0 %755
    %757 = vrot.lane.b32.xlu0 %v734, 8
    %v758 = vpop.permute.xlu0 %757
    %763 = vrot.lane.b32.xlu0 %v739, 16
    %v764 = vpop.permute.xlu0 %763
    %765 = vrot.lane.b32.xlu0 %v742, 16
    %v766 = vpop.permute.xlu0 %765
    %771 = vrot.lane.b32.xlu0 %v747, 24
    %v772 = vpop.permute.xlu0 %771
    %773 = vrot.lane.b32.xlu0 %v750, 24
    %v774 = vpop.permute.xlu0 %773
    %v777 = vsel %vm477, %v723, %v756
    %v778 = vsel %vm477, %v726, %v758
    %vm779 = vcmask 130048
    %v780 = vsel %vm779, %v777, %v764
    %v781 = vsel %vm779, %v778, %v766
    %vm782 = vcmask 195584
    %v783 = vsel %vm782, %v780, %v772
    %v784 = vsel %vm782, %v781, %v774
    %v785 = vpack.c.bf16 %v784, %v783
    %v786 = vld [vmem:[#allocation7] sm:$0xf]
    %v787 = vld [vmem:[#allocation7 + $0x4] sm:$0xf]
    %v788 = vld [vmem:[#allocation7 + $0x8] sm:$0xf]
    %v789 = vld [vmem:[#allocation7 + $0xc] sm:$0xf]
    %v790 = vld [vmem:[%s4] sm:$0x1]
    %v792 = vlaneseq
    %v793 = vshrl.u32 %v792, 7
    %v794 = vsub.s32 0, %v793
    %v795 = vrot.slane %v790, %v794
    %v801 = vunpack.c.l.b16 %v786
    %v802 = vunpack.c.l.b16 %v787
    %v803 = vunpack.c.l.b16 %v788
    %v804 = vunpack.c.l.b16 %v789
    %v805 = vpack.c.b16 %v802, %v801
    %v806 = vpack.c.b16 %v804, %v803
    %v810 = vsel %vm142, %v785, 0
    %812 = vmatprep.subr.bf16.mxu0 0
    %813 = vmatpush1.bf16.msra.mxu0 %v805
    %814 = vmatprep.subr.bf16.mxu0 0
    %815 = vmatpush1.bf16.msra.mxu0 %v806
    %816 = vmatprep.subr.bf16.mxu0 0
    %817 = vmatpush1.bf16.msra.mxu0 0
    %818 = vmatprep.subr.bf16.mxu0 0
    %819 = vmatpush1.bf16.msra.mxu0 0
    %820 = vmatprep.subr.bf16.mxu0 0
    %821 = vmatpush1.bf16.msra.mxu0 0
    %822 = vmatprep.subr.bf16.mxu0 0
    %823 = vmatpush1.bf16.msra.mxu0 0
    %824 = vmatprep.subr.bf16.mxu0 0
    %825 = vmatpush1.bf16.msra.mxu0 0
    %826 = vmatprep.subr.bf16.mxu0 0
    %827 = vmatpush1.bf16.msra.mxu0 0
    %828 = vmatprep.subr.bf16.mxu0 0
    %829 = vmatpush1.bf16.msra.mxu0 0
    %830 = vmatprep.subr.bf16.mxu0 0
    %831 = vmatpush1.bf16.msra.mxu0 0
    %832 = vmatprep.subr.bf16.mxu0 0
    %833 = vmatpush1.bf16.msra.mxu0 0
    %834 = vmatprep.subr.bf16.mxu0 0
    %835 = vmatpush1.bf16.msra.mxu0 0
    %836 = vmatprep.subr.bf16.mxu0 0
    %837 = vmatpush1.bf16.msra.mxu0 0
    %838 = vmatprep.subr.bf16.mxu0 0
    %839 = vmatpush1.bf16.msra.mxu0 0
    %840 = vmatprep.subr.bf16.mxu0 0
    %841 = vmatpush1.bf16.msra.mxu0 0
    %842 = vmatprep.subr.bf16.mxu0 0
    %843 = vmatpush1.bf16.msra.mxu0 0
    %844 = vmatprep.mubr.bf16.mxu0 0
    %845 = vmatmul.mubr.bf16.gmra.mrb[0].mxu0 %v810
    %v846 = vpop.f32.mrb[0].mxu0
    %v847 = vadd.f32 %v795, %v846
    %v848 = vpop.f32.mrb[0].mxu0
    %v849 = vpop.f32.mrb[0].mxu0
    %v850 = vadd.f32 %v795, %v849
    %v851 = vpop.f32.mrb[0].mxu0
    %852 = vdwg.mxu0
    %853 = vst.msk [vmem:[#allocation13] sm:$0xff] %vm142, %v847
    %854 = vst.msk [vmem:[#allocation13 + $0x8] sm:$0xff] %vm142, %v850
    // Predicated region
    $region62: #{tpu_custom_call.1} parent=1 // pred_check
      _
    $region63: #{tpu_custom_call.1} parent=1 // pred_check_branch
      %856 = sbr.rel (0) target = $region65
    $region64: #{tpu_custom_call.1} parent=1 // pred_region
      %s858 = ssub.s32 256, 256
      %859 = vsyncadd [#allocation4], %s858
      %s860 = sshll.u32 [#allocation13], 4
      %s861 = int_to_ptr.vmem [resolvable:$true] %s860
      %866 = dma.vmem_to_hbm [thread:$0]  %s861, 256, %s9, [#allocation4], 128, 128, 8
    $region65: #{tpu_custom_call.1} parent=1 // pred_fallthru
      _
    // Predicated region
    $region66: #{tpu_custom_call.1} parent=1 // pred_check
      _
    $region67: #{tpu_custom_call.1} parent=1 // pred_check_branch
      %868 = sbr.rel (0) target = $region69
    $region68: #{tpu_custom_call.1} parent=1 // pred_region
      %869 = dma.done [#allocation4], 256
    $region69: #{tpu_custom_call.1} parent=1 // pred_fallthru
      _
    %870 = vsyncpa [#allocation3], 1
    %871 = vsyncpa [#allocation6], 1
    %872 = vsyncpa [#allocation9], 1
    %873 = vsyncpa [#allocation12], 1
    %874 = vsyncpa [#allocation4], 1

</llo_original>
